<compile_context>
chip_gen: v7x
topology: tpu7x:2x2x1
jax: 0.10.0
libtpu: 0.0.40
codegen_flags: <defaults>
</compile_context>

<pallas_src>
import jax
import jax.numpy as jnp
from jax.experimental import pallas as pl
from jax.experimental.pallas import tpu as pltpu


def _softplus(x):
    # Numerically stable softplus: log(1 + exp(x)) = max(x, 0) + log1p(exp(-|x|))
    return jnp.maximum(x, 0.0) + jnp.log1p(jnp.exp(-jnp.abs(x)))


# Contract the last dim of both operands: (bm, K) . (N, K) -> (bm, N)  ==  x @ W^T.
_DDN = (((1,), (1,)), ((), ()))


def ssm_kernel(h_ref, w1_ref, b1_ref, w2_ref, b2_ref, wh_ref, bh_ref,
               mu_ref, sigma_ref):
    cdt = w1_ref.dtype                                # bf16 compute dtype
    h = h_ref[...].astype(cdt)                        # (bm, H)

    # layer1 + ReLU: (bm, H) . (L, H)^T -> (bm, L), f32 accumulation on the MXU.
    x1 = jax.lax.dot_general(h, w1_ref[...], _DDN,
                             preferred_element_type=jnp.float32) + b1_ref[...]
    x1 = jnp.maximum(x1, 0.0)

    # layer2 + ReLU: (bm, L) . (L, L)^T -> (bm, L)
    x2 = jax.lax.dot_general(x1.astype(cdt), w2_ref[...], _DDN,
                             preferred_element_type=jnp.float32) + b2_ref[...]
    x2 = jnp.maximum(x2, 0.0)

    # Fused mu/sigma head: (bm, L) . (2Z, L)^T -> (bm, 2Z)
    y = jax.lax.dot_general(x2.astype(cdt), wh_ref[...], _DDN,
                            preferred_element_type=jnp.float32) + bh_ref[...]

    z = mu_ref.shape[1]
    mu_ref[...] = y[:, :z].astype(mu_ref.dtype)
    # sigma = softplus(.) + 0.001 in f32 (EUP work rides its own VLIW slot).
    sigma_ref[...] = (_softplus(y[:, z:]) + 0.001).astype(sigma_ref.dtype)


def _round_up(x, m):
    return ((x + m - 1) // m) * m


def _plan_batch(batch, max_bm=1024):
    """Return (bm, padded_batch).

    Batch sits on the sublane (second-to-last) axis, so tiles only need to be a
    multiple of 8.  Always emit >= 2 "parallel" grid steps (keeps both v7x
    TensorCores busy); cap the tile at `max_bm` rows so huge batches still
    pipeline their HBM traffic with few, large steps.
    """
    n_steps = max(2, -(-batch // max_bm))          # ceil-div, at least 2 steps
    bm = _round_up(-(-batch // n_steps), 8)        # sublane-aligned tile
    return bm, bm * n_steps


def _block_vmem_bytes(shape, itemsize):
    # VMEM blocks pad the trailing two dims to (8 sublanes, 128 lanes).
    sub = _round_up(shape[-2], 8)
    lane = _round_up(shape[-1], 128)
    return sub * lane * itemsize


def _vmem_limit_bytes(bm, hidden, layer, latent, in_itemsize, w_itemsize):
    blocks = (
        _block_vmem_bytes((bm, hidden), in_itemsize)        # h tile
        + _block_vmem_bytes((layer, hidden), w_itemsize)    # w1
        + _block_vmem_bytes((1, layer), 4)                  # b1
        + _block_vmem_bytes((layer, layer), w_itemsize)     # w2
        + _block_vmem_bytes((1, layer), 4)                  # b2
        + _block_vmem_bytes((2 * latent, layer), w_itemsize)  # fused head weight
        + _block_vmem_bytes((1, 2 * latent), 4)             # fused head bias
        + 2 * _block_vmem_bytes((bm, latent), 4)            # mu, sigma
    )
    acts = (2 * _block_vmem_bytes((bm, layer), 4)            # x1, x2
            + _block_vmem_bytes((bm, 2 * latent), 4)         # y
            + _block_vmem_bytes((bm, hidden), w_itemsize))   # bf16 copy of h
    est = 2 * blocks + acts                                  # 2x: default double buffering
    # ~2x the estimate + 2 MiB headroom for Mosaic internals; capped well below
    # v7x's 64 MiB physical VMEM so surrounding XLA fusions aren't starved.
    return int(min(2 * est + (2 << 20), 40 << 20))


def stochastic_state_model(h, params, *, compute_dtype=jnp.bfloat16):
    """Forward pass of StochasticStateModel.

    Returns (mu, sigma) — the parameters of the Normal the PyTorch module builds.
    `params` uses PyTorch nn.Linear layout: weights (out_features, in_features),
    biases 1-D (out_features,).
    """
    B, H = h.shape
    L = params["w1"].shape[0]
    Z = params["w_mu"].shape[0]

    bm, Bp = _plan_batch(B)
    if Bp != B:
        # Pad at most (8 * num_steps - 1) rows; padded rows are computed and discarded
        # (rows are independent: every matmul contracts only feature dims).
        h = jnp.pad(h, ((0, Bp - B), (0, 0)))
    grid = (Bp // bm,)

    # Weight prep (one-time): bf16 operands for single-pass MXU; fused mu/sigma head.
    w1 = params["w1"].astype(compute_dtype)                       # (L, H)
    w2 = params["w2"].astype(compute_dtype)                       # (L, L)
    wh = jnp.concatenate([params["w_mu"], params["w_sigma"]],
                         axis=0).astype(compute_dtype)            # (2Z, L)
    b1 = params["b1"].reshape(1, L).astype(jnp.float32)
    b2 = params["b2"].reshape(1, L).astype(jnp.float32)
    bh = jnp.concatenate([params["b_mu"], params["b_sigma"]],
                         axis=0).reshape(1, 2 * Z).astype(jnp.float32)

    full = lambda i: (0, 0)
    tile = lambda i: (i, 0)

    mu, sigma = pl.pallas_call(
        ssm_kernel,
        out_shape=(jax.ShapeDtypeStruct((Bp, Z), jnp.float32),
                   jax.ShapeDtypeStruct((Bp, Z), jnp.float32)),
        grid_spec=pltpu.PrefetchScalarGridSpec(
            num_scalar_prefetch=0,
            grid=grid,
            in_specs=[
                pl.BlockSpec((bm, H), tile),          # h tile (batch on sublanes)
                pl.BlockSpec((L, H), full),           # w1
                pl.BlockSpec((1, L), full),           # b1
                pl.BlockSpec((L, L), full),           # w2
                pl.BlockSpec((1, L), full),           # b2
                pl.BlockSpec((2 * Z, L), full),       # fused head weight
                pl.BlockSpec((1, 2 * Z), full),       # fused head bias
            ],
            out_specs=[
                pl.BlockSpec((bm, Z), tile),          # mu
                pl.BlockSpec((bm, Z), tile),          # sigma
            ],
        ),
        compiler_params=pltpu.CompilerParams(
            dimension_semantics=("parallel",),
            vmem_limit_bytes=_vmem_limit_bytes(
                bm, H, L, Z, h.dtype.itemsize, jnp.dtype(compute_dtype).itemsize),
        ),
    )(h, w1, b1, w2, b2, wh, bh)

    if Bp != B:
        mu, sigma = mu[:B], sigma[:B]
    return mu, sigma


def init_params(key, hidden_size, latent_size, layer_size):
    """Deterministic synthetic init mirroring PyTorch nn.Linear ((out, in) weights)."""
    ks = jax.random.split(key, 8)

    def lin(kw, kb, fan_in, fan_out):
        bound = 1.0 / jnp.sqrt(fan_in)
        w = jax.random.uniform(kw, (fan_out, fan_in), jnp.float32, -bound, bound)
        b = jax.random.uniform(kb, (fan_out,), jnp.float32, -bound, bound)
        return w, b

    w1, b1 = lin(ks[0], ks[1], hidden_size, layer_size)
    w2, b2 = lin(ks[2], ks[3], layer_size, layer_size)
    w_mu, b_mu = lin(ks[4], ks[5], layer_size, latent_size)
    w_sigma, b_sigma = lin(ks[6], ks[7], layer_size, latent_size)
    return dict(w1=w1, b1=b1, w2=w2, b2=b2,
                w_mu=w_mu, b_mu=b_mu, w_sigma=w_sigma, b_sigma=b_sigma)


def reference_f32(h, p):
    """Pure float32 reference matching the PyTorch module's math."""
    x1 = jnp.maximum(h @ p["w1"].T + p["b1"], 0.0)
    x2 = jnp.maximum(x1 @ p["w2"].T + p["b2"], 0.0)
    mu = x2 @ p["w_mu"].T + p["b_mu"]
    sigma = jax.nn.softplus(x2 @ p["w_sigma"].T + p["b_sigma"]) + 0.001
    return mu, sigma


def reference_matched(h, p, compute_dtype=jnp.bfloat16):
    """Reference with the same bf16-operand / f32-accumulate math as the kernel."""
    cd = compute_dtype
    x1 = jnp.maximum(
        jax.lax.dot_general(h.astype(cd), p["w1"].astype(cd), _DDN,
                            preferred_element_type=jnp.float32) + p["b1"], 0.0)
    x2 = jnp.maximum(
        jax.lax.dot_general(x1.astype(cd), p["w2"].astype(cd), _DDN,
                            preferred_element_type=jnp.float32) + p["b2"], 0.0)
    wh = jnp.concatenate([p["w_mu"], p["w_sigma"]], axis=0).astype(cd)
    bh = jnp.concatenate([p["b_mu"], p["b_sigma"]], axis=0)
    y = jax.lax.dot_general(x2.astype(cd), wh, _DDN,
                            preferred_element_type=jnp.float32) + bh
    z = p["w_mu"].shape[0]
    return y[:, :z], _softplus(y[:, z:]) + 0.001


if __name__ == "__main__":
    hidden_size, latent_size, layer_size = 32, 16, 64
    batch = 8

    key = jax.random.PRNGKey(0)
    k_h, k_p = jax.random.split(key)

    h = jax.random.normal(k_h, (batch, hidden_size), jnp.float32)
    params = init_params(k_p, hidden_size, latent_size, layer_size)

    fwd = jax.jit(stochastic_state_model)
    mu, sigma = fwd(h, params)
    mu, sigma = jax.block_until_ready((mu, sigma))

    assert mu.shape == (batch, latent_size) and sigma.shape == (batch, latent_size)

    # Tight check against a reference with identical bf16-operand / f32-accumulate math.
    mu_m, sigma_m = reference_matched(h, params)
    assert jnp.allclose(mu, mu_m, atol=2e-4, rtol=2e-4), "mu mismatch vs matched ref"
    assert jnp.allclose(sigma, sigma_m, atol=2e-4, rtol=2e-4), "sigma mismatch vs matched ref"

    # Loose check against the pure-f32 PyTorch-semantics reference (bf16 operand cast).
    mu_f, sigma_f = reference_f32(h, params)
    assert jnp.allclose(mu, mu_f, atol=3e-2, rtol=3e-2), "mu mismatch vs f32 ref"
    assert jnp.allclose(sigma, sigma_f, atol=3e-2, rtol=3e-2), "sigma mismatch vs f32 ref"

    assert bool(jnp.all(sigma > 0.0))

    # TODO(synk): PyTorch returns a torch.distributions.Normal object (and runs isnan
    # asserts); here we return its (mu, sigma) parameters — sampling/log_prob are
    # distribution-level glue outside the kernel.
    print("KERNEL_OK")
</pallas_src>

<mosaic_0001>
module attributes {stable_mosaic.version = 11 : i64} {
  func.func @ssm_kernel(%arg0: i32, %arg1: memref<8x32xf32, #tpu.memory_space<vmem>>, %arg2: memref<64x32xbf16, #tpu.memory_space<vmem>>, %arg3: memref<1x64xf32, #tpu.memory_space<vmem>>, %arg4: memref<64x64xbf16, #tpu.memory_space<vmem>>, %arg5: memref<1x64xf32, #tpu.memory_space<vmem>>, %arg6: memref<32x64xbf16, #tpu.memory_space<vmem>>, %arg7: memref<1x32xf32, #tpu.memory_space<vmem>>, %arg8: memref<8x16xf32, #tpu.memory_space<vmem>>, %arg9: memref<8x16xf32, #tpu.memory_space<vmem>>) attributes {dimension_semantics = [#tpu.dimension_semantics<parallel>], iteration_bounds = array<i64: 2>, scalar_prefetch = 0 : i64, scratch_operands = 0 : i64, tpu.core_type = #tpu.core_type<tc>, window_params = [{transform_indices = @transform_0, window_bounds = array<i64: 8, 32>}, {pipeline_mode = #tpu.pipeline_mode<synchronous>, transform_indices = @transform_1, window_bounds = array<i64: 64, 32>}, {pipeline_mode = #tpu.pipeline_mode<synchronous>, transform_indices = @transform_2, window_bounds = array<i64: 1, 64>}, {pipeline_mode = #tpu.pipeline_mode<synchronous>, transform_indices = @transform_3, window_bounds = array<i64: 64, 64>}, {pipeline_mode = #tpu.pipeline_mode<synchronous>, transform_indices = @transform_4, window_bounds = array<i64: 1, 64>}, {pipeline_mode = #tpu.pipeline_mode<synchronous>, transform_indices = @transform_5, window_bounds = array<i64: 32, 64>}, {pipeline_mode = #tpu.pipeline_mode<synchronous>, transform_indices = @transform_6, window_bounds = array<i64: 1, 32>}, {transform_indices = @transform_7, window_bounds = array<i64: 8, 16>}, {transform_indices = @transform_8, window_bounds = array<i64: 8, 16>}]} {
    %c0 = arith.constant 0 : index
    %c0_0 = arith.constant 0 : index
    %0 = vector.load %arg1[%c0, %c0_0] : memref<8x32xf32, #tpu.memory_space<vmem>>, vector<8x32xf32>
    %1 = arith.truncf %0 : vector<8x32xf32> to vector<8x32xbf16>
    %c0_1 = arith.constant 0 : index
    %c0_2 = arith.constant 0 : index
    %2 = vector.load %arg2[%c0_1, %c0_2] : memref<64x32xbf16, #tpu.memory_space<vmem>>, vector<64x32xbf16>
    %cst = arith.constant dense<0.000000e+00> : vector<8x64xf32>
    %3 = tpu.matmul %1, %2, %cst {dimension_numbers = #tpu.dot_dimension_numbers<[1], [1], [0], [0], [0, 0, 1, 0], [], []>} : vector<8x32xbf16>, vector<64x32xbf16>, vector<8x64xf32> -> vector<8x64xf32>
    %c0_3 = arith.constant 0 : index
    %c0_4 = arith.constant 0 : index
    %4 = vector.load %arg3[%c0_3, %c0_4] : memref<1x64xf32, #tpu.memory_space<vmem>>, vector<1x64xf32>
    %5 = vector.broadcast %4 : vector<1x64xf32> to vector<8x64xf32>
    %6 = arith.addf %3, %5 : vector<8x64xf32>
    %cst_5 = arith.constant 0.000000e+00 : f32
    %7 = vector.broadcast %cst_5 : f32 to vector<8x64xf32>
    %8 = arith.maximumf %6, %7 : vector<8x64xf32>
    %9 = arith.truncf %8 : vector<8x64xf32> to vector<8x64xbf16>
    %c0_6 = arith.constant 0 : index
    %c0_7 = arith.constant 0 : index
    %10 = vector.load %arg4[%c0_6, %c0_7] : memref<64x64xbf16, #tpu.memory_space<vmem>>, vector<64x64xbf16>
    %cst_8 = arith.constant dense<0.000000e+00> : vector<8x64xf32>
    %11 = tpu.matmul %9, %10, %cst_8 {dimension_numbers = #tpu.dot_dimension_numbers<[1], [1], [0], [0], [0, 0, 1, 0], [], []>} : vector<8x64xbf16>, vector<64x64xbf16>, vector<8x64xf32> -> vector<8x64xf32>
    %c0_9 = arith.constant 0 : index
    %c0_10 = arith.constant 0 : index
    %12 = vector.load %arg5[%c0_9, %c0_10] : memref<1x64xf32, #tpu.memory_space<vmem>>, vector<1x64xf32>
    %13 = vector.broadcast %12 : vector<1x64xf32> to vector<8x64xf32>
    %14 = arith.addf %11, %13 : vector<8x64xf32>
    %cst_11 = arith.constant 0.000000e+00 : f32
    %15 = vector.broadcast %cst_11 : f32 to vector<8x64xf32>
    %16 = arith.maximumf %14, %15 : vector<8x64xf32>
    %17 = arith.truncf %16 : vector<8x64xf32> to vector<8x64xbf16>
    %c0_12 = arith.constant 0 : index
    %c0_13 = arith.constant 0 : index
    %18 = vector.load %arg6[%c0_12, %c0_13] : memref<32x64xbf16, #tpu.memory_space<vmem>>, vector<32x64xbf16>
    %cst_14 = arith.constant dense<0.000000e+00> : vector<8x32xf32>
    %19 = tpu.matmul %17, %18, %cst_14 {dimension_numbers = #tpu.dot_dimension_numbers<[1], [1], [0], [0], [0, 0, 1, 0], [], []>} : vector<8x64xbf16>, vector<32x64xbf16>, vector<8x32xf32> -> vector<8x32xf32>
    %c0_15 = arith.constant 0 : index
    %c0_16 = arith.constant 0 : index
    %20 = vector.load %arg7[%c0_15, %c0_16] : memref<1x32xf32, #tpu.memory_space<vmem>>, vector<1x32xf32>
    %21 = vector.broadcast %20 : vector<1x32xf32> to vector<8x32xf32>
    %22 = arith.addf %19, %21 : vector<8x32xf32>
    %23 = vector.extract_strided_slice %22 {offsets = [0, 0], sizes = [8, 16], strides = [1, 1]} : vector<8x32xf32> to vector<8x16xf32>
    %c0_17 = arith.constant 0 : index
    %c0_18 = arith.constant 0 : index
    %24 = vector.load %arg8[%c0_17, %c0_18] : memref<8x16xf32, #tpu.memory_space<vmem>>, vector<8x16xf32>
    tpu.vector_store %arg8[%c0_17, %c0_18], %23 {strides = array<i32>} : memref<8x16xf32, #tpu.memory_space<vmem>>, vector<8x16xf32>,
    %25 = vector.extract_strided_slice %22 {offsets = [0, 16], sizes = [8, 16], strides = [1, 1]} : vector<8x32xf32> to vector<8x16xf32>
    %cst_19 = arith.constant 0.000000e+00 : f32
    %26 = vector.broadcast %cst_19 : f32 to vector<8x16xf32>
    %27 = arith.maximumf %25, %26 : vector<8x16xf32>
    %28 = math.absf %25 : vector<8x16xf32>
    %cst_20 = arith.constant 0.000000e+00 : f32
    %29 = vector.broadcast %cst_20 : f32 to vector<8x16xf32>
    %30 = arith.subf %29, %28 : vector<8x16xf32>
    %31 = math.exp %30 : vector<8x16xf32>
    %32 = math.log1p %31 : vector<8x16xf32>
    %33 = arith.addf %27, %32 : vector<8x16xf32>
    %cst_21 = arith.constant 1.000000e-03 : f32
    %34 = vector.broadcast %cst_21 : f32 to vector<8x16xf32>
    %35 = arith.addf %33, %34 : vector<8x16xf32>
    %c0_22 = arith.constant 0 : index
    %c0_23 = arith.constant 0 : index
    %36 = vector.load %arg9[%c0_22, %c0_23] : memref<8x16xf32, #tpu.memory_space<vmem>>, vector<8x16xf32>
    tpu.vector_store %arg9[%c0_22, %c0_23], %35 {strides = array<i32>} : memref<8x16xf32, #tpu.memory_space<vmem>>, vector<8x16xf32>,
    return
  }
  func.func @transform_0(%arg0: i32) -> (i32, i32) {
    %c0_i32 = arith.constant 0 : i32
    %c0_i32_0 = arith.constant 0 : i32
    return %arg0, %c0_i32 : i32, i32
  }
  func.func @transform_1(%arg0: i32) -> (i32, i32) {
    %c0_i32 = arith.constant 0 : i32
    %c0_i32_0 = arith.constant 0 : i32
    %c0_i32_1 = arith.constant 0 : i32
    return %c0_i32, %c0_i32_0 : i32, i32
  }
  func.func @transform_2(%arg0: i32) -> (i32, i32) {
    %c0_i32 = arith.constant 0 : i32
    %c0_i32_0 = arith.constant 0 : i32
    %c0_i32_1 = arith.constant 0 : i32
    return %c0_i32, %c0_i32_0 : i32, i32
  }
  func.func @transform_3(%arg0: i32) -> (i32, i32) {
    %c0_i32 = arith.constant 0 : i32
    %c0_i32_0 = arith.constant 0 : i32
    %c0_i32_1 = arith.constant 0 : i32
    return %c0_i32, %c0_i32_0 : i32, i32
  }
  func.func @transform_4(%arg0: i32) -> (i32, i32) {
    %c0_i32 = arith.constant 0 : i32
    %c0_i32_0 = arith.constant 0 : i32
    %c0_i32_1 = arith.constant 0 : i32
    return %c0_i32, %c0_i32_0 : i32, i32
  }
  func.func @transform_5(%arg0: i32) -> (i32, i32) {
    %c0_i32 = arith.constant 0 : i32
    %c0_i32_0 = arith.constant 0 : i32
    %c0_i32_1 = arith.constant 0 : i32
    return %c0_i32, %c0_i32_0 : i32, i32
  }
  func.func @transform_6(%arg0: i32) -> (i32, i32) {
    %c0_i32 = arith.constant 0 : i32
    %c0_i32_0 = arith.constant 0 : i32
    %c0_i32_1 = arith.constant 0 : i32
    return %c0_i32, %c0_i32_0 : i32, i32
  }
  func.func @transform_7(%arg0: i32) -> (i32, i32) {
    %c0_i32 = arith.constant 0 : i32
    %c0_i32_0 = arith.constant 0 : i32
    return %arg0, %c0_i32 : i32, i32
  }
  func.func @transform_8(%arg0: i32) -> (i32, i32) {
    %c0_i32 = arith.constant 0 : i32
    %c0_i32_0 = arith.constant 0 : i32
    return %arg0, %c0_i32 : i32, i32
  }
}

</mosaic_0001>

<llo_original>
// kernel: stochastic_state_model.1
$region0: #{stochastic_state_model.1}
  #allocation0 [shape = 'u32[]', space=smem, size = 0x4, offset = 0x4, fixed_abs, tag = 'smem constant byte address 0x4 - core index']
  #allocation1 [shape = 'u32[144,128]{1,0:T(1,128)}', space=vmem, size = 0x12000, scoped, tag = 'internal scratch']
  %s0 = inlined_call_operand.vmem [shape: f32[16,32], index: 0, kind: input, shape index: {}]
  %s1 = inlined_call_operand.vmem [shape: bf16[64,32], index: 1, kind: input, shape index: {}]
  %s2 = inlined_call_operand.vmem [shape: f32[1,64], index: 2, kind: input, shape index: {}]
  %s3 = inlined_call_operand.vmem [shape: bf16[64,64], index: 3, kind: input, shape index: {}]
  %s4 = inlined_call_operand.vmem [shape: f32[1,64], index: 4, kind: input, shape index: {}]
  %s5 = inlined_call_operand.vmem [shape: bf16[32,64], index: 5, kind: input, shape index: {}]
  %s6 = inlined_call_operand.vmem [shape: f32[1,32], index: 6, kind: input, shape index: {}]
  %s7 = inlined_call_operand.vmem [shape: f32[16,16], index: 7, kind: output, shape index: {0}]
  %s8 = inlined_call_operand.vmem [shape: f32[16,16], index: 8, kind: output, shape index: {1}]
  %9 = xla_tuple %s7, %s8
  %s10 = sld [smem:[#allocation0]]
  $region69: #{stochastic_state_model.1} parent=0
    _
  %s12 = ssub.s32 1, %s10
  %s13 = scalar_select 0, %s12, %s10
  loop: start=0, step=1, limit=4
  $region2: #{stochastic_state_model.1} parent=0 // loop_pre_header
    _
  $region3: #{stochastic_state_model.1} parent=0 // loop_header
    %s15 = sphi 0, %s19
    %p16 = scmp.ge.s32.totalorder %s15, 4
    %s25 = sphi 0, %s27
    %s28 = sphi 0, %s25
    %s29 = sphi 0, %s28
    %s45 = sphi 0, %s29
    %s49 = sphi 0, %s49
    %s51 = sphi 0, %s49
    %s52 = sphi 0, %s51
    %s66 = sphi 0, %s52
    %s70 = sphi 0, %s70
    %s72 = sphi 0, %s70
    %s73 = sphi 0, %s72
    %s87 = sphi 0, %s73
    %s91 = sphi 0, %s91
    %s93 = sphi 0, %s91
    %s94 = sphi 0, %s93
    %s108 = sphi 0, %s94
    %s112 = sphi 0, %s112
    %s114 = sphi 0, %s112
    %s115 = sphi 0, %s114
    %s129 = sphi 0, %s115
    %s133 = sphi 0, %s133
    %s135 = sphi 0, %s133
    %s136 = sphi 0, %s135
    %s150 = sphi 0, %s136
    %s154 = sphi 0, %s154
    %s156 = sphi 0, %s154
    %s157 = sphi 0, %s156
    %s171 = sphi 0, %s157
    %s177 = sphi 0, %s179
    %s180 = sphi 0, %s177
    %s181 = sphi 0, %s180
    %s197 = sphi 0, %s181
    %s203 = sphi 0, %s205
    %s206 = sphi 0, %s203
    %s207 = sphi 0, %s206
    %s223 = sphi 0, %s207
  $region4: #{stochastic_state_model.1} parent=0 // loop_header_branch
    %18 = sbr.rel (%p16) target = $region8
  $region5: #{stochastic_state_model.1} parent=0 // loop_body
    %s20 = ssub.s32 %s15, 1
    %s21 = ssub.s32 %s15, 2
    %s22 = sadd.s32 %s15, 1
    %s23 = ssub.s32 %s15, %s22
    %p24 = scmp.eq.s32.totalorder %s23, 0
    %s26 = sadd.s32 %s25, 1
    %s27 = scalar_select %p24, %s25, %s26
    %p30 = pneg %p24
    %p31 = scmp.eq.s32.totalorder %s15, 1
    %p32 = por %p30, %p31
    %p33 = scmp.ne.s32.totalorder %s25, %s28
    %p34 = scmp.eq.s32.totalorder %s15, 0
    %p35 = por %p33, %p34
    %p36 = scmp.ne.s32.totalorder %s25, %s28
    %p37 = scmp.eq.s32.totalorder %s20, 1
    %p38 = por %p36, %p37
    %p39 = scmp.ne.s32.totalorder %s28, %s29
    %p40 = scmp.eq.s32.totalorder %s20, 0
    %p41 = por %p39, %p40
    %p42 = scmp.ne.s32.totalorder %s28, %s29
    %p43 = scmp.eq.s32.totalorder %s21, 1
    %p44 = por %p42, %p43
    %p46 = scmp.ne.s32.totalorder %s29, %s45
    %p47 = scmp.eq.s32.totalorder %s21, 0
    %p48 = por %p46, %p47
    %s50 = sadd.s32 %s49, 1
    %p53 = scmp.eq.s32.totalorder %s15, 1
    %p54 = scmp.ne.s32.totalorder %s49, %s51
    %p55 = scmp.eq.s32.totalorder %s15, 0
    %p56 = por %p54, %p55
    %p57 = scmp.ne.s32.totalorder %s49, %s51
    %p58 = scmp.eq.s32.totalorder %s20, 1
    %p59 = por %p57, %p58
    %p60 = scmp.ne.s32.totalorder %s51, %s52
    %p61 = scmp.eq.s32.totalorder %s20, 0
    %p62 = por %p60, %p61
    %p63 = scmp.ne.s32.totalorder %s51, %s52
    %p64 = scmp.eq.s32.totalorder %s21, 1
    %p65 = por %p63, %p64
    %p67 = scmp.ne.s32.totalorder %s52, %s66
    %p68 = scmp.eq.s32.totalorder %s21, 0
    %p69 = por %p67, %p68
    %s71 = sadd.s32 %s70, 1
    %p74 = scmp.eq.s32.totalorder %s15, 1
    %p75 = scmp.ne.s32.totalorder %s70, %s72
    %p76 = scmp.eq.s32.totalorder %s15, 0
    %p77 = por %p75, %p76
    %p78 = scmp.ne.s32.totalorder %s70, %s72
    %p79 = scmp.eq.s32.totalorder %s20, 1
    %p80 = por %p78, %p79
    %p81 = scmp.ne.s32.totalorder %s72, %s73
    %p82 = scmp.eq.s32.totalorder %s20, 0
    %p83 = por %p81, %p82
    %p84 = scmp.ne.s32.totalorder %s72, %s73
    %p85 = scmp.eq.s32.totalorder %s21, 1
    %p86 = por %p84, %p85
    %p88 = scmp.ne.s32.totalorder %s73, %s87
    %p89 = scmp.eq.s32.totalorder %s21, 0
    %p90 = por %p88, %p89
    %s92 = sadd.s32 %s91, 1
    %p95 = scmp.eq.s32.totalorder %s15, 1
    %p96 = scmp.ne.s32.totalorder %s91, %s93
    %p97 = scmp.eq.s32.totalorder %s15, 0
    %p98 = por %p96, %p97
    %p99 = scmp.ne.s32.totalorder %s91, %s93
    %p100 = scmp.eq.s32.totalorder %s20, 1
    %p101 = por %p99, %p100
    %p102 = scmp.ne.s32.totalorder %s93, %s94
    %p103 = scmp.eq.s32.totalorder %s20, 0
    %p104 = por %p102, %p103
    %p105 = scmp.ne.s32.totalorder %s93, %s94
    %p106 = scmp.eq.s32.totalorder %s21, 1
    %p107 = por %p105, %p106
    %p109 = scmp.ne.s32.totalorder %s94, %s108
    %p110 = scmp.eq.s32.totalorder %s21, 0
    %p111 = por %p109, %p110
    %s113 = sadd.s32 %s112, 1
    %p116 = scmp.eq.s32.totalorder %s15, 1
    %p117 = scmp.ne.s32.totalorder %s112, %s114
    %p118 = scmp.eq.s32.totalorder %s15, 0
    %p119 = por %p117, %p118
    %p120 = scmp.ne.s32.totalorder %s112, %s114
    %p121 = scmp.eq.s32.totalorder %s20, 1
    %p122 = por %p120, %p121
    %p123 = scmp.ne.s32.totalorder %s114, %s115
    %p124 = scmp.eq.s32.totalorder %s20, 0
    %p125 = por %p123, %p124
    %p126 = scmp.ne.s32.totalorder %s114, %s115
    %p127 = scmp.eq.s32.totalorder %s21, 1
    %p128 = por %p126, %p127
    %p130 = scmp.ne.s32.totalorder %s115, %s129
    %p131 = scmp.eq.s32.totalorder %s21, 0
    %p132 = por %p130, %p131
    %s134 = sadd.s32 %s133, 1
    %p137 = scmp.eq.s32.totalorder %s15, 1
    %p138 = scmp.ne.s32.totalorder %s133, %s135
    %p139 = scmp.eq.s32.totalorder %s15, 0
    %p140 = por %p138, %p139
    %p141 = scmp.ne.s32.totalorder %s133, %s135
    %p142 = scmp.eq.s32.totalorder %s20, 1
    %p143 = por %p141, %p142
    %p144 = scmp.ne.s32.totalorder %s135, %s136
    %p145 = scmp.eq.s32.totalorder %s20, 0
    %p146 = por %p144, %p145
    %p147 = scmp.ne.s32.totalorder %s135, %s136
    %p148 = scmp.eq.s32.totalorder %s21, 1
    %p149 = por %p147, %p148
    %p151 = scmp.ne.s32.totalorder %s136, %s150
    %p152 = scmp.eq.s32.totalorder %s21, 0
    %p153 = por %p151, %p152
    %s155 = sadd.s32 %s154, 1
    %p158 = scmp.eq.s32.totalorder %s15, 1
    %p159 = scmp.ne.s32.totalorder %s154, %s156
    %p160 = scmp.eq.s32.totalorder %s15, 0
    %p161 = por %p159, %p160
    %p162 = scmp.ne.s32.totalorder %s154, %s156
    %p163 = scmp.eq.s32.totalorder %s20, 1
    %p164 = por %p162, %p163
    %p165 = scmp.ne.s32.totalorder %s156, %s157
    %p166 = scmp.eq.s32.totalorder %s20, 0
    %p167 = por %p165, %p166
    %p168 = scmp.ne.s32.totalorder %s156, %s157
    %p169 = scmp.eq.s32.totalorder %s21, 1
    %p170 = por %p168, %p169
    %p172 = scmp.ne.s32.totalorder %s157, %s171
    %p173 = scmp.eq.s32.totalorder %s21, 0
    %p174 = por %p172, %p173
    %s175 = ssub.s32 %s15, %s22
    %p176 = scmp.eq.s32.totalorder %s175, 0
    %s178 = sadd.s32 %s177, 1
    %s179 = scalar_select %p176, %s177, %s178
    %p182 = pneg %p176
    %p183 = scmp.eq.s32.totalorder %s15, 1
    %p184 = por %p182, %p183
    %p185 = scmp.ne.s32.totalorder %s177, %s180
    %p186 = scmp.eq.s32.totalorder %s15, 0
    %p187 = por %p185, %p186
    %p188 = scmp.ne.s32.totalorder %s177, %s180
    %p189 = scmp.eq.s32.totalorder %s20, 1
    %p190 = por %p188, %p189
    %p191 = scmp.ne.s32.totalorder %s180, %s181
    %p192 = scmp.eq.s32.totalorder %s20, 0
    %p193 = por %p191, %p192
    %p194 = scmp.ne.s32.totalorder %s180, %s181
    %p195 = scmp.eq.s32.totalorder %s21, 1
    %p196 = por %p194, %p195
    %p198 = scmp.ne.s32.totalorder %s181, %s197
    %p199 = scmp.eq.s32.totalorder %s21, 0
    %p200 = por %p198, %p199
    %s201 = ssub.s32 %s15, %s22
    %p202 = scmp.eq.s32.totalorder %s201, 0
    %s204 = sadd.s32 %s203, 1
    %s205 = scalar_select %p202, %s203, %s204
    %p208 = pneg %p202
    %p209 = scmp.eq.s32.totalorder %s15, 1
    %p210 = por %p208, %p209
    %p211 = scmp.ne.s32.totalorder %s203, %s206
    %p212 = scmp.eq.s32.totalorder %s15, 0
    %p213 = por %p211, %p212
    %p214 = scmp.ne.s32.totalorder %s203, %s206
    %p215 = scmp.eq.s32.totalorder %s20, 1
    %p216 = por %p214, %p215
    %p217 = scmp.ne.s32.totalorder %s206, %s207
    %p218 = scmp.eq.s32.totalorder %s20, 0
    %p219 = por %p217, %p218
    %p220 = scmp.ne.s32.totalorder %s206, %s207
    %p221 = scmp.eq.s32.totalorder %s21, 1
    %p222 = por %p220, %p221
    %p224 = scmp.ne.s32.totalorder %s207, %s223
    %p225 = scmp.eq.s32.totalorder %s21, 0
    %p226 = por %p224, %p225
    %p227 = scmp.le.s32.totalorder 1, %s15
    %p228 = scmp.lt.s32.totalorder %s15, 3
    %p229 = pnand %p227, %p228
    %p230 = pneg %p229
    // Predicated region
    $region9: #{stochastic_state_model.1} parent=5 // pred_check
      _
    $region10: #{stochastic_state_model.1} parent=5 // pred_check_branch
      %232 = sbr.rel (%p229) target = $region12
    $region11: #{stochastic_state_model.1} parent=5 // pred_region
      %s233 = ssub.s32 %s15, 1
      // Predicated region
      $region13: #{stochastic_state_model.1} parent=11 // pred_check
        %p234 = pneg %p62
      $region14: #{stochastic_state_model.1} parent=11 // pred_check_branch
        %236 = sbr.rel (%p234) target = $region16
      $region15: #{stochastic_state_model.1} parent=11 // pred_region
        _
      $region16: #{stochastic_state_model.1} parent=11 // pred_fallthru
        _
      // Predicated region
      $region17: #{stochastic_state_model.1} parent=11 // pred_check
        %p237 = pneg %p83
      $region18: #{stochastic_state_model.1} parent=11 // pred_check_branch
        %239 = sbr.rel (%p237) target = $region20
      $region19: #{stochastic_state_model.1} parent=11 // pred_region
        _
      $region20: #{stochastic_state_model.1} parent=11 // pred_fallthru
        _
      // Predicated region
      $region21: #{stochastic_state_model.1} parent=11 // pred_check
        %p240 = pneg %p104
      $region22: #{stochastic_state_model.1} parent=11 // pred_check_branch
        %242 = sbr.rel (%p240) target = $region24
      $region23: #{stochastic_state_model.1} parent=11 // pred_region
        _
      $region24: #{stochastic_state_model.1} parent=11 // pred_fallthru
        _
      // Predicated region
      $region25: #{stochastic_state_model.1} parent=11 // pred_check
        %p243 = pneg %p125
      $region26: #{stochastic_state_model.1} parent=11 // pred_check_branch
        %245 = sbr.rel (%p243) target = $region28
      $region27: #{stochastic_state_model.1} parent=11 // pred_region
        _
      $region28: #{stochastic_state_model.1} parent=11 // pred_fallthru
        _
      // Predicated region
      $region29: #{stochastic_state_model.1} parent=11 // pred_check
        %p246 = pneg %p146
      $region30: #{stochastic_state_model.1} parent=11 // pred_check_branch
        %248 = sbr.rel (%p246) target = $region32
      $region31: #{stochastic_state_model.1} parent=11 // pred_region
        _
      $region32: #{stochastic_state_model.1} parent=11 // pred_fallthru
        _
      // Predicated region
      $region33: #{stochastic_state_model.1} parent=11 // pred_check
        %p249 = pneg %p167
      $region34: #{stochastic_state_model.1} parent=11 // pred_check_branch
        %251 = sbr.rel (%p249) target = $region36
      $region35: #{stochastic_state_model.1} parent=11 // pred_region
        _
      $region36: #{stochastic_state_model.1} parent=11 // pred_fallthru
        _
    $region12: #{stochastic_state_model.1} parent=5 // pred_fallthru
      _
    %p252 = scmp.lt.s32.totalorder %s15, 2
    // Predicated region
    $region37: #{stochastic_state_model.1} parent=5 // pred_check
      %p253 = pneg %p252
    $region38: #{stochastic_state_model.1} parent=5 // pred_check_branch
      %255 = sbr.rel (%p253) target = $region40
    $region39: #{stochastic_state_model.1} parent=5 // pred_region
      // Predicated region
      $region41: #{stochastic_state_model.1} parent=39 // pred_check
        %p256 = pneg %p35
      $region42: #{stochastic_state_model.1} parent=39 // pred_check_branch
        %258 = sbr.rel (%p256) target = $region44
      $region43: #{stochastic_state_model.1} parent=39 // pred_region
        %p259 = scmp.lt.s32.totalorder %s15, 1
        %s260 = scalar_select %p259, %s15, 1
        %s261 = smul.addr %s260, 8
        %s262 = scalar_lea.vmem %s0, %s261
      $region44: #{stochastic_state_model.1} parent=39 // pred_fallthru
        _
    $region40: #{stochastic_state_model.1} parent=5 // pred_fallthru
      _
    %p263 = scmp.le.s32.totalorder 1, %s15
    %p264 = scmp.lt.s32.totalorder %s15, 3
    %p265 = pnand %p263, %p264
    %p266 = pneg %p265
    // Predicated region
    $region45: #{stochastic_state_model.1} parent=5 // pred_check
      _
    $region46: #{stochastic_state_model.1} parent=5 // pred_check_branch
      %268 = sbr.rel (%p265) target = $region48
    $region47: #{stochastic_state_model.1} parent=5 // pred_region
      %s269 = ssub.s32 %s15, 1
      %p270 = scmp.lt.s32.totalorder %s20, 1
      %s271 = scalar_select %p270, %s20, 1
      %s272 = smul.addr %s271, 8
      %s273 = scalar_lea.vmem %s0, %s272
      %p274 = pneg %p41
      %p275 = pneg %p38
      %p276 = pneg %p62
      %p277 = pneg %p59
      %p278 = pneg %p83
      %p279 = pneg %p80
      %p280 = pneg %p104
      %p281 = pneg %p101
      %p282 = pneg %p125
      %p283 = pneg %p122
      %p284 = pneg %p146
      %p285 = pneg %p143
      %p286 = pneg %p167
      %p287 = pneg %p164
      %p288 = pneg %p193
      %p289 = pneg %p190
      %p290 = scmp.lt.s32.totalorder %s20, 1
      %s291 = scalar_select %p290, %s20, 1
      %s292 = smul.addr %s291, 8
      %s293 = scalar_lea.vmem %s7, %s292
      %p294 = pneg %p219
      %p295 = pneg %p216
      %p296 = scmp.lt.s32.totalorder %s20, 1
      %s297 = scalar_select %p296, %s20, 1
      %s298 = smul.addr %s297, 8
      %s299 = scalar_lea.vmem %s8, %s298
      %p300 = scmp.lt.s32.totalorder %s20, 1
      %s301 = scalar_select %p300, %s20, 1
      %s302 = smul.addr %s301, 8
      %s303 = scalar_lea.vmem %s0, %s302
      %p304 = scmp.lt.s32.totalorder %s20, 1
      %s305 = scalar_select %p304, %s20, 1
      %s306 = smul.addr %s305, 8
      %s307 = scalar_lea.vmem %s7, %s306
      %p308 = scmp.lt.s32.totalorder %s20, 1
      %s309 = scalar_select %p308, %s20, 1
      %s310 = smul.addr %s309, 8
      %s311 = scalar_lea.vmem %s8, %s310
      %v313 = vld [vmem:[%s303] sm:$0xff]
      %v314 = vpack.c.bf16 %v313, %v313
      %v315 = vld [vmem:[%s1] sm:$0xf]
      %v316 = vld [vmem:[%s1 + $0x4] sm:$0xf]
      %v317 = vld [vmem:[%s1 + $0x8] sm:$0xf]
      %v318 = vld [vmem:[%s1 + $0xc] sm:$0xf]
      %v319 = vld [vmem:[%s1 + $0x10] sm:$0xf]
      %v320 = vld [vmem:[%s1 + $0x14] sm:$0xf]
      %v321 = vld [vmem:[%s1 + $0x18] sm:$0xf]
      %v322 = vld [vmem:[%s1 + $0x1c] sm:$0xf]
      %v323 = vld [vmem:[%s2] sm:$0x1]
      %v325 = vlaneseq
      %v326 = vshrl.u32 %v325, 7
      %v327 = vsub.s32 0, %v326
      %v328 = vrot.slane %v323, %v327
      %v338 = vunpack.c.l.b16 %v315
      %v339 = vunpack.c.l.b16 %v316
      %v340 = vunpack.c.l.b16 %v317
      %v341 = vunpack.c.l.b16 %v318
      %v342 = vunpack.c.l.b16 %v319
      %v343 = vunpack.c.l.b16 %v320
      %v344 = vunpack.c.l.b16 %v321
      %v345 = vunpack.c.l.b16 %v322
      %v346 = vpack.c.b16 %v339, %v338
      %v347 = vpack.c.b16 %v341, %v340
      %v348 = vpack.c.b16 %v343, %v342
      %v349 = vpack.c.b16 %v345, %v344
      %vm350 = vcmask 261120
      %v352 = vsel %vm350, %v314, 0
      %v355 = vsel %vm350, %v346, 0
      %v358 = vsel %vm350, %v347, 0
      %v361 = vsel %vm350, %v348, 0
      %v364 = vsel %vm350, %v349, 0
      %366 = vmatprep.subr.bf16.mxu0 0
      %367 = vmatpush1.bf16.xpose.msra.mxu0 %v355
      %368 = vmatprep.subr.bf16.mxu0 0
      %369 = vmatpush1.bf16.xpose.msra.mxu0 %v358
      %370 = vmatprep.subr.bf16.mxu0 0
      %371 = vmatpush1.bf16.xpose.msra.mxu0 %v361
      %372 = vmatprep.subr.bf16.mxu0 0
      %373 = vmatpush1.bf16.xpose.msra.mxu0 %v364
      %374 = vmatprep.subr.bf16.mxu0 0
      %375 = vmatpush1.bf16.xpose.msra.mxu0 0
      %376 = vmatprep.subr.bf16.mxu0 0
      %377 = vmatpush1.bf16.xpose.msra.mxu0 0
      %378 = vmatprep.subr.bf16.mxu0 0
      %379 = vmatpush1.bf16.xpose.msra.mxu0 0
      %380 = vmatprep.subr.bf16.mxu0 0
      %381 = vmatpush1.bf16.xpose.msra.mxu0 0
      %382 = vmatprep.subr.bf16.mxu0 0
      %383 = vmatpush1.bf16.xpose.msra.mxu0 0
      %384 = vmatprep.subr.bf16.mxu0 0
      %385 = vmatpush1.bf16.xpose.msra.mxu0 0
      %386 = vmatprep.subr.bf16.mxu0 0
      %387 = vmatpush1.bf16.xpose.msra.mxu0 0
      %388 = vmatprep.subr.bf16.mxu0 0
      %389 = vmatpush1.bf16.xpose.msra.mxu0 0
      %390 = vmatprep.subr.bf16.mxu0 0
      %391 = vmatpush1.bf16.xpose.msra.mxu0 0
      %392 = vmatprep.subr.bf16.mxu0 0
      %393 = vmatpush1.bf16.xpose.msra.mxu0 0
      %394 = vmatprep.subr.bf16.mxu0 0
      %395 = vmatpush1.bf16.xpose.msra.mxu0 0
      %396 = vmatprep.subr.bf16.mxu0 0
      %397 = vmatpush1.bf16.xpose.msra.mxu0 0
      %398 = vmatprep.mubr.bf16.mxu0 0
      %399 = vmatmul.mubr.bf16.gmra.mrb[0].mxu0 %v352
      %v400 = vpop.f32.mrb[0].mxu0
      %v401 = vadd.f32 %v328, %v400
      %v402 = vpop.f32.mrb[0].mxu0
      %v403 = vpop.f32.mrb[0].mxu0
      %v404 = vpop.f32.mrb[0].mxu0
      %405 = vdwg.mxu0
      %v406 = vmax.f32 %v401, 0.0
      %v407 = vpack.c.bf16 %v406, %v406
      %v408 = vld [vmem:[%s3] sm:$0xf]
      %v409 = vld [vmem:[%s3 + $0x4] sm:$0xf]
      %v410 = vld [vmem:[%s3 + $0x8] sm:$0xf]
      %v411 = vld [vmem:[%s3 + $0xc] sm:$0xf]
      %v412 = vld [vmem:[%s3 + $0x10] sm:$0xf]
      %v413 = vld [vmem:[%s3 + $0x14] sm:$0xf]
      %v414 = vld [vmem:[%s3 + $0x18] sm:$0xf]
      %v415 = vld [vmem:[%s3 + $0x1c] sm:$0xf]
      %v416 = vld [vmem:[%s4] sm:$0x1]
      %v418 = vlaneseq
      %v419 = vshrl.u32 %v418, 7
      %v420 = vsub.s32 0, %v419
      %v421 = vrot.slane %v416, %v420
      %v431 = vunpack.c.l.b16 %v408
      %v432 = vunpack.c.l.b16 %v409
      %v433 = vunpack.c.l.b16 %v410
      %v434 = vunpack.c.l.b16 %v411
      %v435 = vunpack.c.l.b16 %v412
      %v436 = vunpack.c.l.b16 %v413
      %v437 = vunpack.c.l.b16 %v414
      %v438 = vunpack.c.l.b16 %v415
      %v439 = vpack.c.b16 %v432, %v431
      %v440 = vpack.c.b16 %v434, %v433
      %v441 = vpack.c.b16 %v436, %v435
      %v442 = vpack.c.b16 %v438, %v437
      %vm443 = vcmask 523264
      %v445 = vsel %vm443, %v407, 0
      %v448 = vsel %vm443, %v439, 0
      %v451 = vsel %vm443, %v440, 0
      %v454 = vsel %vm443, %v441, 0
      %v457 = vsel %vm443, %v442, 0
      %459 = vmatprep.subr.bf16.mxu0 0
      %460 = vmatpush1.bf16.xpose.msra.mxu0 %v448
      %461 = vmatprep.subr.bf16.mxu0 0
      %462 = vmatpush1.bf16.xpose.msra.mxu0 %v451
      %463 = vmatprep.subr.bf16.mxu0 0
      %464 = vmatpush1.bf16.xpose.msra.mxu0 %v454
      %465 = vmatprep.subr.bf16.mxu0 0
      %466 = vmatpush1.bf16.xpose.msra.mxu0 %v457
      %467 = vmatprep.subr.bf16.mxu0 0
      %468 = vmatpush1.bf16.xpose.msra.mxu0 0
      %469 = vmatprep.subr.bf16.mxu0 0
      %470 = vmatpush1.bf16.xpose.msra.mxu0 0
      %471 = vmatprep.subr.bf16.mxu0 0
      %472 = vmatpush1.bf16.xpose.msra.mxu0 0
      %473 = vmatprep.subr.bf16.mxu0 0
      %474 = vmatpush1.bf16.xpose.msra.mxu0 0
      %475 = vmatprep.subr.bf16.mxu0 0
      %476 = vmatpush1.bf16.xpose.msra.mxu0 0
      %477 = vmatprep.subr.bf16.mxu0 0
      %478 = vmatpush1.bf16.xpose.msra.mxu0 0
      %479 = vmatprep.subr.bf16.mxu0 0
      %480 = vmatpush1.bf16.xpose.msra.mxu0 0
      %481 = vmatprep.subr.bf16.mxu0 0
      %482 = vmatpush1.bf16.xpose.msra.mxu0 0
      %483 = vmatprep.subr.bf16.mxu0 0
      %484 = vmatpush1.bf16.xpose.msra.mxu0 0
      %485 = vmatprep.subr.bf16.mxu0 0
      %486 = vmatpush1.bf16.xpose.msra.mxu0 0
      %487 = vmatprep.subr.bf16.mxu0 0
      %488 = vmatpush1.bf16.xpose.msra.mxu0 0
      %489 = vmatprep.subr.bf16.mxu0 0
      %490 = vmatpush1.bf16.xpose.msra.mxu0 0
      %491 = vmatprep.mubr.bf16.mxu0 0
      %492 = vmatmul.mubr.bf16.gmra.mrb[0].mxu0 %v445
      %v493 = vpop.f32.mrb[0].mxu0
      %v494 = vadd.f32 %v421, %v493
      %v495 = vpop.f32.mrb[0].mxu0
      %v496 = vpop.f32.mrb[0].mxu0
      %v497 = vpop.f32.mrb[0].mxu0
      %498 = vdwg.mxu0
      %v499 = vmax.f32 %v494, 0.0
      %v500 = vpack.c.bf16 %v499, %v499
      %v501 = vld [vmem:[%s5] sm:$0xf]
      %v502 = vld [vmem:[%s5 + $0x4] sm:$0xf]
      %v503 = vld [vmem:[%s5 + $0x8] sm:$0xf]
      %v504 = vld [vmem:[%s5 + $0xc] sm:$0xf]
      %v505 = vld [vmem:[%s6] sm:$0x1]
      %v507 = vlaneseq
      %v508 = vshrl.u32 %v507, 7
      %v509 = vsub.s32 0, %v508
      %v510 = vrot.slane %v505, %v509
      %v516 = vunpack.c.l.b16 %v501
      %v517 = vunpack.c.l.b16 %v502
      %v518 = vunpack.c.l.b16 %v503
      %v519 = vunpack.c.l.b16 %v504
      %v520 = vpack.c.b16 %v517, %v516
      %v521 = vpack.c.b16 %v519, %v518
      %v523 = vsel %vm443, %v500, 0
      %v526 = vsel %vm443, %v520, 0
      %v529 = vsel %vm443, %v521, 0
      %531 = vmatprep.subr.bf16.mxu0 0
      %532 = vmatpush1.bf16.xpose.msra.mxu0 %v526
      %533 = vmatprep.subr.bf16.mxu0 0
      %534 = vmatpush1.bf16.xpose.msra.mxu0 %v529
      %535 = vmatprep.subr.bf16.mxu0 0
      %536 = vmatpush1.bf16.xpose.msra.mxu0 0
      %537 = vmatprep.subr.bf16.mxu0 0
      %538 = vmatpush1.bf16.xpose.msra.mxu0 0
      %539 = vmatprep.subr.bf16.mxu0 0
      %540 = vmatpush1.bf16.xpose.msra.mxu0 0
      %541 = vmatprep.subr.bf16.mxu0 0
      %542 = vmatpush1.bf16.xpose.msra.mxu0 0
      %543 = vmatprep.subr.bf16.mxu0 0
      %544 = vmatpush1.bf16.xpose.msra.mxu0 0
      %545 = vmatprep.subr.bf16.mxu0 0
      %546 = vmatpush1.bf16.xpose.msra.mxu0 0
      %547 = vmatprep.subr.bf16.mxu0 0
      %548 = vmatpush1.bf16.xpose.msra.mxu0 0
      %549 = vmatprep.subr.bf16.mxu0 0
      %550 = vmatpush1.bf16.xpose.msra.mxu0 0
      %551 = vmatprep.subr.bf16.mxu0 0
      %552 = vmatpush1.bf16.xpose.msra.mxu0 0
      %553 = vmatprep.subr.bf16.mxu0 0
      %554 = vmatpush1.bf16.xpose.msra.mxu0 0
      %555 = vmatprep.subr.bf16.mxu0 0
      %556 = vmatpush1.bf16.xpose.msra.mxu0 0
      %557 = vmatprep.subr.bf16.mxu0 0
      %558 = vmatpush1.bf16.xpose.msra.mxu0 0
      %559 = vmatprep.subr.bf16.mxu0 0
      %560 = vmatpush1.bf16.xpose.msra.mxu0 0
      %561 = vmatprep.subr.bf16.mxu0 0
      %562 = vmatpush1.bf16.xpose.msra.mxu0 0
      %563 = vmatprep.mubr.bf16.mxu0 0
      %564 = vmatmul.mubr.bf16.gmra.mrb[0].mxu0 %v523
      %v565 = vpop.f32.mrb[0].mxu0
      %v566 = vadd.f32 %v510, %v565
      %v567 = vpop.f32.mrb[0].mxu0
      %v568 = vpop.f32.mrb[0].mxu0
      %v569 = vpop.f32.mrb[0].mxu0
      %570 = vdwg.mxu0
      %vm571 = vcmask 130048
      %572 = vst.msk [vmem:[%s307] sm:$0xff] %vm571, %v566
      %v573 = vmax.f32 %v566, 0.0
      %v574 = vand.u32 2147483647, %v566
      %v575 = vsub.f32 0.0, %v574
      %v576 = vmul.f32 %v575, 1.442695
      %v577 = vpow.pop %v576
      %v578 = vadd.f32 %v577, 1.0
      %v579 = vlog2.pop %v578
      %v580 = vmul.f32 %v579, 0.6931472
      %v581 = vmul.f32 -0.5, %v577
      %v582 = vadd.f32 %v581, 1.0
      %v583 = vmul.f32 %v582, %v577
      %v584 = vand.u32 2147483647, %v577
      %vm585 = vcmp.lt.f32.partialorder %v584, 0.0004427343
      %v586 = vsel %vm585, %v583, %v580
      %v587 = vadd.f32 %v573, %v586
      %v588 = vadd.f32 %v587, 0.001
      %590 = vrot.lane.b32.xlu0 %v588, 112
      %v591 = vpop.permute.xlu0 %590
      %593 = vst.msk [vmem:[%s311] sm:$0xff] %vm571, %v591
      %p594 = scmp.lt.s32.totalorder %s20, 1
      %s595 = scalar_select %p594, %s20, 1
      %s596 = smul.addr %s595, 8
      %s597 = scalar_lea.vmem %s7, %s596
      %p598 = scmp.lt.s32.totalorder %s20, 1
      %s599 = scalar_select %p598, %s20, 1
      %s600 = smul.addr %s599, 8
      %s601 = scalar_lea.vmem %s8, %s600
      // Predicated region
      $region49: #{stochastic_state_model.1} parent=47 // pred_check
        %p602 = pneg %p190
      $region50: #{stochastic_state_model.1} parent=47 // pred_check_branch
        %604 = sbr.rel (%p602) target = $region52
      $region51: #{stochastic_state_model.1} parent=47 // pred_region
        _
      $region52: #{stochastic_state_model.1} parent=47 // pred_fallthru
        _
      // Predicated region
      $region53: #{stochastic_state_model.1} parent=47 // pred_check
        %p605 = pneg %p216
      $region54: #{stochastic_state_model.1} parent=47 // pred_check_branch
        %607 = sbr.rel (%p605) target = $region56
      $region55: #{stochastic_state_model.1} parent=47 // pred_region
        _
      $region56: #{stochastic_state_model.1} parent=47 // pred_fallthru
        _
    $region48: #{stochastic_state_model.1} parent=5 // pred_fallthru
      _
    %p608 = scmp.le.s32.totalorder 2, %s15
    // Predicated region
    $region57: #{stochastic_state_model.1} parent=5 // pred_check
      %p609 = pneg %p608
    $region58: #{stochastic_state_model.1} parent=5 // pred_check_branch
      %611 = sbr.rel (%p609) target = $region60
    $region59: #{stochastic_state_model.1} parent=5 // pred_region
      %s612 = ssub.s32 %s15, 2
      // Predicated region
      $region61: #{stochastic_state_model.1} parent=59 // pred_check
        %p613 = pneg %p196
      $region62: #{stochastic_state_model.1} parent=59 // pred_check_branch
        %615 = sbr.rel (%p613) target = $region64
      $region63: #{stochastic_state_model.1} parent=59 // pred_region
        %p616 = scmp.lt.s32.totalorder %s21, 1
        %s617 = scalar_select %p616, %s21, 1
        %s618 = smul.addr %s617, 8
        %s619 = scalar_lea.vmem %s7, %s618
      $region64: #{stochastic_state_model.1} parent=59 // pred_fallthru
        _
      // Predicated region
      $region65: #{stochastic_state_model.1} parent=59 // pred_check
        %p620 = pneg %p222
      $region66: #{stochastic_state_model.1} parent=59 // pred_check_branch
        %622 = sbr.rel (%p620) target = $region68
      $region67: #{stochastic_state_model.1} parent=59 // pred_region
        %p623 = scmp.lt.s32.totalorder %s21, 1
        %s624 = scalar_select %p623, %s21, 1
        %s625 = smul.addr %s624, 8
        %s626 = scalar_lea.vmem %s8, %s625
      $region68: #{stochastic_state_model.1} parent=59 // pred_fallthru
        _
    $region60: #{stochastic_state_model.1} parent=5 // pred_fallthru
      _
  $region6: #{stochastic_state_model.1} parent=0 // loop_footer
    %s19 = sadd.s32 1, %s15
  $region7: #{stochastic_state_model.1} parent=0 // loop_footer_branch
    %14 = sbr.rel target = $region3
  $region8: #{stochastic_state_model.1} parent=0 // loop_exit
    _

</llo_original>
